<compile_context>
chip_gen: v5e
topology: v5e:2x2
jax: 0.10.0
libtpu: 0.0.40
codegen_flags: <defaults>
</compile_context>

<pallas_src>
import functools

import jax
import jax.numpy as jnp
from jax.experimental import pallas as pl
from jax.experimental.pallas import tpu as pltpu


def _softplus(z):
    # Numerically stable softplus (matches F.softplus), kept in f32.
    return jnp.maximum(z, 0.0) + jnp.log1p(jnp.exp(-jnp.abs(z)))


def actor_beta_kernel(x_ref, w1_ref, b1_ref, w2_ref, b2_ref, wh_ref, bh_ref,
                      alpha_ref, beta_ref):
    # x_ref : (bb, S)  batch-major state tile (contiguous HBM, no wrapper transpose)
    # w1_ref: (H, S)   b1_ref: (H, 1)      (pre-transposed at param-prep time)
    # w2_ref: (H, H)   b2_ref: (H, 1)
    # wh_ref: (2A, H)  bh_ref: (2A, 1)     (fused alpha|beta head)
    # alpha_ref / beta_ref: (bb, A) batch-major output tiles
    x = x_ref[...]                                           # (bb, S)

    # h1[h, b] = sum_s W1^T[h, s] * x[b, s]  -> dot(A, B^T) MXU form, lane-dense out.
    h1 = jnp.tanh(
        jnp.dot(w1_ref[...], x.T, preferred_element_type=jnp.float32)
        + b1_ref[...]
    )                                                        # (H, bb)
    h2 = jnp.tanh(
        jnp.dot(w2_ref[...], h1, preferred_element_type=jnp.float32)
        + b2_ref[...]
    )                                                        # (H, bb)
    z = jnp.dot(wh_ref[...], h2, preferred_element_type=jnp.float32) + bh_ref[...]
    out = _softplus(z) + 1.0                                 # (2A, bb) lane-dense EUP work

    out_bm = out.T                                           # (bb, 2A) single XLU transpose
    a = alpha_ref.shape[-1]
    alpha_ref[...] = out_bm[:, :a]
    beta_ref[...] = out_bm[:, a:]


def _default_block_b(B):
    if B < 256:
        return B                                   # single fat step; latency regime
    half = -(-B // 2)                              # ceil(B / 2): >=2 steps for megacore
    half = ((half + 127) // 128) * 128             # lane-dense multiple of 128
    return min(half, 4096)                         # VMEM cap (batch-major tiles pad to 128 lanes)


@functools.partial(jax.jit, static_argnames=("block_b",))
def actor_beta_forward(state, kernel_params, *, block_b=None):
    """state: (B, state_dim) f32.  kernel_params: from prepare_kernel_params().
    Returns (alpha, beta), each (B, action_dim) f32, all entries >= 1."""
    w1t, b1c, w2t, b2c, wht, bhc = kernel_params
    B, S = state.shape
    H = w1t.shape[0]
    A2 = wht.shape[0]
    A = A2 // 2

    if block_b is None:
        block_b = _default_block_b(B)

    grid = (pl.cdiv(B, block_b),)
    const = lambda shape: pl.BlockSpec(shape, lambda i: (0, 0))   # VMEM-resident params

    alpha, beta = pl.pallas_call(
        actor_beta_kernel,
        out_shape=(
            jax.ShapeDtypeStruct((B, A), jnp.float32),
            jax.ShapeDtypeStruct((B, A), jnp.float32),
        ),
        grid_spec=pltpu.PrefetchScalarGridSpec(
            num_scalar_prefetch=0,
            grid=grid,
            in_specs=[
                pl.BlockSpec((block_b, S), lambda i: (i, 0)),     # batch-major state tile
                const((H, S)), const((H, 1)),                     # l1
                const((H, H)), const((H, 1)),                     # l2
                const((A2, H)), const((A2, 1)),                   # fused alpha|beta head
            ],
            out_specs=[
                pl.BlockSpec((block_b, A), lambda i: (i, 0)),     # alpha
                pl.BlockSpec((block_b, A), lambda i: (i, 0)),     # beta
            ],
        ),
        compiler_params=pltpu.CompilerParams(
            dimension_semantics=("parallel",),
            vmem_limit_bytes=32 * 1024 * 1024,
        ),
    )(state, w1t, b1c, w2t, b2c, wht, bhc)
    return alpha, beta


def prepare_kernel_params(params):
    """One-time layout prep (outside the per-call jitted path): transpose weights
    to (out, in), fuse the alpha/beta heads, store biases as column vectors."""
    w1, b1, w2, b2, wa, ba, wb, bb = params        # PyTorch layout: (in, out) / (1, out)
    w1t = jnp.asarray(w1).T                        # (H, S)
    w2t = jnp.asarray(w2).T                        # (H, H)
    wht = jnp.concatenate([wa, wb], axis=1).T      # (2A, H)
    b1c = jnp.asarray(b1).T                        # (H, 1)
    b2c = jnp.asarray(b2).T                        # (H, 1)
    bhc = jnp.concatenate([ba, bb], axis=1).T      # (2A, 1)
    return (w1t, b1c, w2t, b2c, wht, bhc)


def init_params(key, state_dim, action_dim, nn_width):
    """Deterministic init mimicking nn.Linear's U(-1/sqrt(fan_in), 1/sqrt(fan_in))."""
    def linear(key, fan_in, fan_out):
        kw, kb = jax.random.split(key)
        bound = 1.0 / jnp.sqrt(jnp.float32(fan_in))
        w = jax.random.uniform(kw, (fan_in, fan_out), jnp.float32, -bound, bound)
        b = jax.random.uniform(kb, (1, fan_out), jnp.float32, -bound, bound)
        return w, b

    k1, k2, k3, k4 = jax.random.split(key, 4)
    w1, b1 = linear(k1, state_dim, nn_width)
    w2, b2 = linear(k2, nn_width, nn_width)
    wa, ba = linear(k3, nn_width, action_dim)
    wb, bb = linear(k4, nn_width, action_dim)
    return (w1, b1, w2, b2, wa, ba, wb, bb)


def reference_forward(state, params):
    w1, b1, w2, b2, wa, ba, wb, bb = params
    a = jnp.tanh(state @ w1 + b1)
    a = jnp.tanh(a @ w2 + b2)
    alpha = jax.nn.softplus(a @ wa + ba) + 1.0
    beta = jax.nn.softplus(a @ wb + bb) + 1.0
    return alpha, beta


if __name__ == "__main__":
    state_dim, action_dim, nn_width = 8, 4, 32

    key = jax.random.PRNGKey(0)
    kp, kx1, kx2 = jax.random.split(key, 3)
    params = init_params(kp, state_dim, action_dim, nn_width)
    kparams = prepare_kernel_params(params)   # layout prep happens once, not per call

    # Case 1: tiny batch, single grid step (block covers the full batch).
    batch = 8
    state = jax.random.normal(kx1, (batch, state_dim), jnp.float32)
    alpha, beta = actor_beta_forward(state, kparams)
    jax.block_until_ready((alpha, beta))
    alpha_ref, beta_ref = reference_forward(state, params)
    assert alpha.shape == (batch, action_dim) and beta.shape == (batch, action_dim)
    assert jnp.allclose(alpha, alpha_ref, atol=1e-5, rtol=1e-5)
    assert jnp.allclose(beta, beta_ref, atol=1e-5, rtol=1e-5)
    assert bool(jnp.all(alpha >= 1.0)) and bool(jnp.all(beta >= 1.0))

    # Case 2: multi-step grid with a ragged last tile (exercises masked writeback
    # and the megacore-friendly >=2-step path).
    batch2 = 200
    state2 = jax.random.normal(kx2, (batch2, state_dim), jnp.float32)
    alpha2, beta2 = actor_beta_forward(state2, kparams, block_b=128)
    jax.block_until_ready((alpha2, beta2))
    alpha2_ref, beta2_ref = reference_forward(state2, params)
    assert alpha2.shape == (batch2, action_dim) and beta2.shape == (batch2, action_dim)
    assert jnp.allclose(alpha2, alpha2_ref, atol=1e-5, rtol=1e-5)
    assert jnp.allclose(beta2, beta2_ref, atol=1e-5, rtol=1e-5)
    assert bool(jnp.all(alpha2 >= 1.0)) and bool(jnp.all(beta2 >= 1.0))

    print("KERNEL_OK")
</pallas_src>

<mosaic_0001>
module attributes {stable_mosaic.version = 11 : i64} {
  func.func @actor_beta_kernel(%arg0: i32, %arg1: memref<8x8xf32, #tpu.memory_space<vmem>>, %arg2: memref<32x8xf32, #tpu.memory_space<vmem>>, %arg3: memref<32x1xf32, #tpu.memory_space<vmem>>, %arg4: memref<32x32xf32, #tpu.memory_space<vmem>>, %arg5: memref<32x1xf32, #tpu.memory_space<vmem>>, %arg6: memref<8x32xf32, #tpu.memory_space<vmem>>, %arg7: memref<8x1xf32, #tpu.memory_space<vmem>>, %arg8: memref<8x4xf32, #tpu.memory_space<vmem>>, %arg9: memref<8x4xf32, #tpu.memory_space<vmem>>) attributes {dimension_semantics = [#tpu.dimension_semantics<parallel>], iteration_bounds = array<i64: 1>, scalar_prefetch = 0 : i64, scratch_operands = 0 : i64, tpu.core_type = #tpu.core_type<tc>, window_params = [{transform_indices = @transform_0, window_bounds = array<i64: 8, 8>}, {pipeline_mode = #tpu.pipeline_mode<synchronous>, transform_indices = @transform_1, window_bounds = array<i64: 32, 8>}, {pipeline_mode = #tpu.pipeline_mode<synchronous>, transform_indices = @transform_2, window_bounds = array<i64: 32, 1>}, {pipeline_mode = #tpu.pipeline_mode<synchronous>, transform_indices = @transform_3, window_bounds = array<i64: 32, 32>}, {pipeline_mode = #tpu.pipeline_mode<synchronous>, transform_indices = @transform_4, window_bounds = array<i64: 32, 1>}, {pipeline_mode = #tpu.pipeline_mode<synchronous>, transform_indices = @transform_5, window_bounds = array<i64: 8, 32>}, {pipeline_mode = #tpu.pipeline_mode<synchronous>, transform_indices = @transform_6, window_bounds = array<i64: 8, 1>}, {transform_indices = @transform_7, window_bounds = array<i64: 8, 4>}, {transform_indices = @transform_8, window_bounds = array<i64: 8, 4>}]} {
    %c0 = arith.constant 0 : index
    %c0_0 = arith.constant 0 : index
    %0 = vector.load %arg1[%c0, %c0_0] : memref<8x8xf32, #tpu.memory_space<vmem>>, vector<8x8xf32>
    %c0_1 = arith.constant 0 : index
    %c0_2 = arith.constant 0 : index
    %1 = vector.load %arg2[%c0_1, %c0_2] : memref<32x8xf32, #tpu.memory_space<vmem>>, vector<32x8xf32>
    %2 = tpu.transpose %0, [1, 0] : vector<8x8xf32> -> vector<8x8xf32>
    %cst = arith.constant dense<0.000000e+00> : vector<32x8xf32>
    %3 = tpu.matmul %1, %2, %cst {dimension_numbers = #tpu.dot_dimension_numbers<[1], [0], [0], [1], [0, 0, 1, 1], [], []>} : vector<32x8xf32>, vector<8x8xf32>, vector<32x8xf32> -> vector<32x8xf32>
    %c0_3 = arith.constant 0 : index
    %c0_4 = arith.constant 0 : index
    %4 = vector.load %arg3[%c0_3, %c0_4] : memref<32x1xf32, #tpu.memory_space<vmem>>, vector<32x1xf32>
    %5 = vector.broadcast %4 : vector<32x1xf32> to vector<32x8xf32>
    %6 = arith.addf %3, %5 : vector<32x8xf32>
    %7 = math.tanh %6 : vector<32x8xf32>
    %c0_5 = arith.constant 0 : index
    %c0_6 = arith.constant 0 : index
    %8 = vector.load %arg4[%c0_5, %c0_6] : memref<32x32xf32, #tpu.memory_space<vmem>>, vector<32x32xf32>
    %cst_7 = arith.constant dense<0.000000e+00> : vector<32x8xf32>
    %9 = tpu.matmul %8, %7, %cst_7 {dimension_numbers = #tpu.dot_dimension_numbers<[1], [0], [0], [1], [0, 0, 1, 1], [], []>} : vector<32x32xf32>, vector<32x8xf32>, vector<32x8xf32> -> vector<32x8xf32>
    %c0_8 = arith.constant 0 : index
    %c0_9 = arith.constant 0 : index
    %10 = vector.load %arg5[%c0_8, %c0_9] : memref<32x1xf32, #tpu.memory_space<vmem>>, vector<32x1xf32>
    %11 = vector.broadcast %10 : vector<32x1xf32> to vector<32x8xf32>
    %12 = arith.addf %9, %11 : vector<32x8xf32>
    %13 = math.tanh %12 : vector<32x8xf32>
    %c0_10 = arith.constant 0 : index
    %c0_11 = arith.constant 0 : index
    %14 = vector.load %arg6[%c0_10, %c0_11] : memref<8x32xf32, #tpu.memory_space<vmem>>, vector<8x32xf32>
    %cst_12 = arith.constant dense<0.000000e+00> : vector<8x8xf32>
    %15 = tpu.matmul %14, %13, %cst_12 {dimension_numbers = #tpu.dot_dimension_numbers<[1], [0], [0], [1], [0, 0, 1, 1], [], []>} : vector<8x32xf32>, vector<32x8xf32>, vector<8x8xf32> -> vector<8x8xf32>
    %c0_13 = arith.constant 0 : index
    %c0_14 = arith.constant 0 : index
    %16 = vector.load %arg7[%c0_13, %c0_14] : memref<8x1xf32, #tpu.memory_space<vmem>>, vector<8x1xf32>
    %17 = vector.broadcast %16 : vector<8x1xf32> to vector<8x8xf32>
    %18 = arith.addf %15, %17 : vector<8x8xf32>
    %cst_15 = arith.constant 0.000000e+00 : f32
    %19 = vector.broadcast %cst_15 : f32 to vector<8x8xf32>
    %20 = arith.maximumf %18, %19 : vector<8x8xf32>
    %21 = math.absf %18 : vector<8x8xf32>
    %cst_16 = arith.constant 0.000000e+00 : f32
    %22 = vector.broadcast %cst_16 : f32 to vector<8x8xf32>
    %23 = arith.subf %22, %21 : vector<8x8xf32>
    %24 = math.exp %23 : vector<8x8xf32>
    %25 = math.log1p %24 : vector<8x8xf32>
    %26 = arith.addf %20, %25 : vector<8x8xf32>
    %cst_17 = arith.constant 1.000000e+00 : f32
    %27 = vector.broadcast %cst_17 : f32 to vector<8x8xf32>
    %28 = arith.addf %26, %27 : vector<8x8xf32>
    %29 = tpu.transpose %28, [1, 0] : vector<8x8xf32> -> vector<8x8xf32>
    %30 = vector.extract_strided_slice %29 {offsets = [0, 0], sizes = [8, 4], strides = [1, 1]} : vector<8x8xf32> to vector<8x4xf32>
    %c0_18 = arith.constant 0 : index
    %c0_19 = arith.constant 0 : index
    %31 = vector.load %arg8[%c0_18, %c0_19] : memref<8x4xf32, #tpu.memory_space<vmem>>, vector<8x4xf32>
    tpu.vector_store %arg8[%c0_18, %c0_19], %30 {strides = array<i32>} : memref<8x4xf32, #tpu.memory_space<vmem>>, vector<8x4xf32>,
    %32 = vector.extract_strided_slice %29 {offsets = [0, 4], sizes = [8, 4], strides = [1, 1]} : vector<8x8xf32> to vector<8x4xf32>
    %c0_20 = arith.constant 0 : index
    %c0_21 = arith.constant 0 : index
    %33 = vector.load %arg9[%c0_20, %c0_21] : memref<8x4xf32, #tpu.memory_space<vmem>>, vector<8x4xf32>
    tpu.vector_store %arg9[%c0_20, %c0_21], %32 {strides = array<i32>} : memref<8x4xf32, #tpu.memory_space<vmem>>, vector<8x4xf32>,
    return
  }
  func.func @transform_0(%arg0: i32) -> (i32, i32) {
    %c0_i32 = arith.constant 0 : i32
    %c0_i32_0 = arith.constant 0 : i32
    return %arg0, %c0_i32 : i32, i32
  }
  func.func @transform_1(%arg0: i32) -> (i32, i32) {
    %c0_i32 = arith.constant 0 : i32
    %c0_i32_0 = arith.constant 0 : i32
    %c0_i32_1 = arith.constant 0 : i32
    return %c0_i32, %c0_i32_0 : i32, i32
  }
  func.func @transform_2(%arg0: i32) -> (i32, i32) {
    %c0_i32 = arith.constant 0 : i32
    %c0_i32_0 = arith.constant 0 : i32
    %c0_i32_1 = arith.constant 0 : i32
    return %c0_i32, %c0_i32_0 : i32, i32
  }
  func.func @transform_3(%arg0: i32) -> (i32, i32) {
    %c0_i32 = arith.constant 0 : i32
    %c0_i32_0 = arith.constant 0 : i32
    %c0_i32_1 = arith.constant 0 : i32
    return %c0_i32, %c0_i32_0 : i32, i32
  }
  func.func @transform_4(%arg0: i32) -> (i32, i32) {
    %c0_i32 = arith.constant 0 : i32
    %c0_i32_0 = arith.constant 0 : i32
    %c0_i32_1 = arith.constant 0 : i32
    return %c0_i32, %c0_i32_0 : i32, i32
  }
  func.func @transform_5(%arg0: i32) -> (i32, i32) {
    %c0_i32 = arith.constant 0 : i32
    %c0_i32_0 = arith.constant 0 : i32
    %c0_i32_1 = arith.constant 0 : i32
    return %c0_i32, %c0_i32_0 : i32, i32
  }
  func.func @transform_6(%arg0: i32) -> (i32, i32) {
    %c0_i32 = arith.constant 0 : i32
    %c0_i32_0 = arith.constant 0 : i32
    %c0_i32_1 = arith.constant 0 : i32
    return %c0_i32, %c0_i32_0 : i32, i32
  }
  func.func @transform_7(%arg0: i32) -> (i32, i32) {
    %c0_i32 = arith.constant 0 : i32
    %c0_i32_0 = arith.constant 0 : i32
    return %arg0, %c0_i32 : i32, i32
  }
  func.func @transform_8(%arg0: i32) -> (i32, i32) {
    %c0_i32 = arith.constant 0 : i32
    %c0_i32_0 = arith.constant 0 : i32
    return %arg0, %c0_i32 : i32, i32
  }
}

</mosaic_0001>

<llo_original>
// kernel: actor_beta_forward.1
$region0: #{actor_beta_forward.1}
  #allocation0 [shape = 'u32[]', space=smem, size = 0x4, offset = 0x4, fixed_abs, tag = 'smem constant byte address 0x4 - core index']
  #allocation1 [shape = 'u32[72,128]{1,0:T(1,128)}', space=vmem, size = 0x9000, scoped, tag = 'internal scratch']
  %s0 = inlined_call_operand.vmem [shape: f32[8,8], index: 0, kind: input, shape index: {}]
  %s1 = inlined_call_operand.vmem [shape: f32[32,8], index: 1, kind: input, shape index: {}]
  %s2 = inlined_call_operand.vmem [shape: f32[32,1], index: 2, kind: input, shape index: {}]
  %s3 = inlined_call_operand.vmem [shape: f32[32,32], index: 3, kind: input, shape index: {}]
  %s4 = inlined_call_operand.vmem [shape: f32[32,1], index: 4, kind: input, shape index: {}]
  %s5 = inlined_call_operand.vmem [shape: f32[8,32], index: 5, kind: input, shape index: {}]
  %s6 = inlined_call_operand.vmem [shape: f32[8,1], index: 6, kind: input, shape index: {}]
  %s7 = inlined_call_operand.vmem [shape: f32[8,4], index: 7, kind: output, shape index: {0}]
  %s8 = inlined_call_operand.vmem [shape: f32[8,4], index: 8, kind: output, shape index: {1}]
  %9 = xla_tuple %s7, %s8
  %s10 = sld [smem:[#allocation0]]
  $region46: #{actor_beta_forward.1} parent=0
    _
  %s12 = ssub.s32 1, %s10
  %s13 = scalar_select 0, %s12, %s10
  // Predicated region
  $region2: #{actor_beta_forward.1} parent=0 // pred_check
    _
  $region3: #{actor_beta_forward.1} parent=0 // pred_check_branch
    %15 = sbr.rel (0) target = $region5
  $region4: #{actor_beta_forward.1} parent=0 // pred_region
    _
  $region5: #{actor_beta_forward.1} parent=0 // pred_fallthru
    _
  // Predicated region
  $region6: #{actor_beta_forward.1} parent=0 // pred_check
    _
  $region7: #{actor_beta_forward.1} parent=0 // pred_check_branch
    %17 = sbr.rel (0) target = $region9
  $region8: #{actor_beta_forward.1} parent=0 // pred_region
    _
  $region9: #{actor_beta_forward.1} parent=0 // pred_fallthru
    _
  // Predicated region
  $region10: #{actor_beta_forward.1} parent=0 // pred_check
    _
  $region11: #{actor_beta_forward.1} parent=0 // pred_check_branch
    %19 = sbr.rel (0) target = $region13
  $region12: #{actor_beta_forward.1} parent=0 // pred_region
    _
  $region13: #{actor_beta_forward.1} parent=0 // pred_fallthru
    _
  // Predicated region
  $region14: #{actor_beta_forward.1} parent=0 // pred_check
    _
  $region15: #{actor_beta_forward.1} parent=0 // pred_check_branch
    %21 = sbr.rel (0) target = $region17
  $region16: #{actor_beta_forward.1} parent=0 // pred_region
    _
  $region17: #{actor_beta_forward.1} parent=0 // pred_fallthru
    _
  // Predicated region
  $region18: #{actor_beta_forward.1} parent=0 // pred_check
    _
  $region19: #{actor_beta_forward.1} parent=0 // pred_check_branch
    %23 = sbr.rel (0) target = $region21
  $region20: #{actor_beta_forward.1} parent=0 // pred_region
    _
  $region21: #{actor_beta_forward.1} parent=0 // pred_fallthru
    _
  // Predicated region
  $region22: #{actor_beta_forward.1} parent=0 // pred_check
    _
  $region23: #{actor_beta_forward.1} parent=0 // pred_check_branch
    %25 = sbr.rel (0) target = $region25
  $region24: #{actor_beta_forward.1} parent=0 // pred_region
    _
  $region25: #{actor_beta_forward.1} parent=0 // pred_fallthru
    _
  // Predicated region
  $region26: #{actor_beta_forward.1} parent=0 // pred_check
    _
  $region27: #{actor_beta_forward.1} parent=0 // pred_check_branch
    %27 = sbr.rel (0) target = $region29
  $region28: #{actor_beta_forward.1} parent=0 // pred_region
    _
  $region29: #{actor_beta_forward.1} parent=0 // pred_fallthru
    _
  %v28 = vld [vmem:[%s0] sm:$0xff]
  %v29 = vld [vmem:[%s1] sm:$0xff]
  %v30 = vld [vmem:[%s1 + $0x8] sm:$0xff]
  %v31 = vld [vmem:[%s1 + $0x10] sm:$0xff]
  %v32 = vld [vmem:[%s1 + $0x18] sm:$0xff]
  %v33 = vld [vmem:[%s2] sm:$0xff]
  %v34 = vld [vmem:[%s2 + $0x8] sm:$0xff]
  %v35 = vld [vmem:[%s2 + $0x10] sm:$0xff]
  %v36 = vld [vmem:[%s2 + $0x18] sm:$0xff]
  %38 = vset.pattern.permute.xlu0 0
  %39 = vperm.xlu0 %38, %v33
  %v40 = vpop.permute.xlu0 %39
  %43 = vset.pattern.permute.xlu0 0
  %44 = vperm.xlu0 %43, %v34
  %v45 = vpop.permute.xlu0 %44
  %48 = vset.pattern.permute.xlu0 0
  %49 = vperm.xlu0 %48, %v35
  %v50 = vpop.permute.xlu0 %49
  %53 = vset.pattern.permute.xlu0 0
  %54 = vperm.xlu0 %53, %v36
  %v55 = vpop.permute.xlu0 %54
  %vm57 = vcmask 64512
  %v59 = vsel %vm57, %v29, 0
  %v62 = vsel %vm57, %v30, 0
  %v65 = vsel %vm57, %v31, 0
  %v68 = vsel %vm57, %v32, 0
  %v71 = vsel %vm57, %v28, 0
  %73 = vmatpush.xpose.msra.mxu0 0.0
  %74 = vmatpush.xpose.msra.mxu0 0.0
  %75 = vmatpush.xpose.msra.mxu0 0.0
  %76 = vmatpush.xpose.msra.mxu0 0.0
  %77 = vmatpush.xpose.msra.mxu0 0.0
  %78 = vmatpush.xpose.msra.mxu0 0.0
  %79 = vmatpush.xpose.msra.mxu0 0.0
  %80 = vmatpush.xpose.msra.mxu0 0.0
  %81 = vmatpush.xpose.msra.mxu0 0.0
  %82 = vmatpush.xpose.msra.mxu0 0.0
  %83 = vmatpush.xpose.msra.mxu0 0.0
  %84 = vmatpush.xpose.msra.mxu0 0.0
  %85 = vmatpush.xpose.msra.mxu0 0.0
  %86 = vmatpush.xpose.msra.mxu0 0.0
  %87 = vmatpush.xpose.msra.mxu0 0.0
  %88 = vmatpush.xpose.msra.mxu0 %v71
  %89 = vmatmul.f32.gmra.mxu0 %v59
  %v90 = vpop.f32.mrf.mxu0
  %v91 = vadd.f32 %v40, %v90
  %92 = vmatmul.f32.gmra.mxu0 %v62
  %v93 = vpop.f32.mrf.mxu0
  %v94 = vadd.f32 %v45, %v93
  %95 = vmatmul.f32.gmra.mxu0 %v65
  %v96 = vpop.f32.mrf.mxu0
  %v97 = vadd.f32 %v50, %v96
  %98 = vmatmul.f32.gmra.mxu0 %v68
  %v99 = vpop.f32.mrf.mxu0
  %v100 = vadd.f32 %v55, %v99
  %101 = vdwg.mxu0
  %v102 = vtanh.pop %v91
  %v103 = vtanh.pop %v94
  %v104 = vtanh.pop %v97
  %v105 = vtanh.pop %v100
  %v106 = vld [vmem:[%s3] sm:$0xff]
  %v107 = vld [vmem:[%s3 + $0x8] sm:$0xff]
  %v108 = vld [vmem:[%s3 + $0x10] sm:$0xff]
  %v109 = vld [vmem:[%s3 + $0x18] sm:$0xff]
  %v110 = vld [vmem:[%s4] sm:$0xff]
  %v111 = vld [vmem:[%s4 + $0x8] sm:$0xff]
  %v112 = vld [vmem:[%s4 + $0x10] sm:$0xff]
  %v113 = vld [vmem:[%s4 + $0x18] sm:$0xff]
  %115 = vset.pattern.permute.xlu0 0
  %116 = vperm.xlu0 %115, %v110
  %v117 = vpop.permute.xlu0 %116
  %120 = vset.pattern.permute.xlu0 0
  %121 = vperm.xlu0 %120, %v111
  %v122 = vpop.permute.xlu0 %121
  %125 = vset.pattern.permute.xlu0 0
  %126 = vperm.xlu0 %125, %v112
  %v127 = vpop.permute.xlu0 %126
  %130 = vset.pattern.permute.xlu0 0
  %131 = vperm.xlu0 %130, %v113
  %v132 = vpop.permute.xlu0 %131
  %vm134 = vcmask 261120
  %v136 = vsel %vm134, %v106, 0
  %v139 = vsel %vm134, %v107, 0
  %v142 = vsel %vm134, %v108, 0
  %v145 = vsel %vm134, %v109, 0
  %147 = vmatpush.msra.mxu0 0.0
  %148 = vmatpush.msra.mxu0 0.0
  %149 = vmatpush.msra.mxu0 0.0
  %150 = vmatpush.msra.mxu0 0.0
  %151 = vmatpush.msra.mxu0 0.0
  %152 = vmatpush.msra.mxu0 0.0
  %153 = vmatpush.msra.mxu0 0.0
  %154 = vmatpush.msra.mxu0 0.0
  %155 = vmatpush.msra.mxu0 0.0
  %156 = vmatpush.msra.mxu0 0.0
  %157 = vmatpush.msra.mxu0 0.0
  %158 = vmatpush.msra.mxu0 0.0
  %159 = vmatpush.msra.mxu0 %v105
  %160 = vmatpush.msra.mxu0 %v104
  %161 = vmatpush.msra.mxu0 %v103
  %162 = vmatpush.msra.mxu0 %v102
  %163 = vmatmul.f32.gmra.mxu0 %v136
  %v164 = vpop.f32.mrf.mxu0
  %v165 = vadd.f32 %v117, %v164
  %166 = vmatmul.f32.gmra.mxu0 %v139
  %v167 = vpop.f32.mrf.mxu0
  %v168 = vadd.f32 %v122, %v167
  %169 = vmatmul.f32.gmra.mxu0 %v142
  %v170 = vpop.f32.mrf.mxu0
  %v171 = vadd.f32 %v127, %v170
  %172 = vmatmul.f32.gmra.mxu0 %v145
  %v173 = vpop.f32.mrf.mxu0
  %v174 = vadd.f32 %v132, %v173
  %175 = vdwg.mxu0
  %v176 = vtanh.pop %v165
  %v177 = vtanh.pop %v168
  %v178 = vtanh.pop %v171
  %v179 = vtanh.pop %v174
  %v180 = vld [vmem:[%s5] sm:$0xff]
  %v181 = vld [vmem:[%s6] sm:$0xff]
  %183 = vset.pattern.permute.xlu0 0
  %184 = vperm.xlu0 %183, %v181
  %v185 = vpop.permute.xlu0 %184
  %v188 = vsel %vm134, %v180, 0
  %190 = vmatpush.msra.mxu0 0.0
  %191 = vmatpush.msra.mxu0 0.0
  %192 = vmatpush.msra.mxu0 0.0
  %193 = vmatpush.msra.mxu0 0.0
  %194 = vmatpush.msra.mxu0 0.0
  %195 = vmatpush.msra.mxu0 0.0
  %196 = vmatpush.msra.mxu0 0.0
  %197 = vmatpush.msra.mxu0 0.0
  %198 = vmatpush.msra.mxu0 0.0
  %199 = vmatpush.msra.mxu0 0.0
  %200 = vmatpush.msra.mxu0 0.0
  %201 = vmatpush.msra.mxu0 0.0
  %202 = vmatpush.msra.mxu0 %v179
  %203 = vmatpush.msra.mxu0 %v178
  %204 = vmatpush.msra.mxu0 %v177
  %205 = vmatpush.msra.mxu0 %v176
  %206 = vmatmul.f32.gmra.mxu0 %v188
  %v207 = vpop.f32.mrf.mxu0
  %v208 = vadd.f32 %v185, %v207
  %209 = vdwg.mxu0
  %v210 = vmax.f32 %v208, 0.0
  %v211 = vand.u32 2147483647, %v208
  %v212 = vsub.f32 0.0, %v211
  %v213 = vmul.f32 %v212, 1.442695
  %v214 = vpow.pop %v213
  %v215 = vadd.f32 %v214, 1.0
  %v216 = vlog2.pop %v215
  %v217 = vmul.f32 %v216, 0.6931472
  %v218 = vmul.f32 -0.5, %v214
  %v219 = vadd.f32 %v218, 1.0
  %v220 = vmul.f32 %v219, %v214
  %v221 = vand.u32 2147483647, %v214
  %vm222 = vcmp.lt.f32.partialorder %v221, 0.0004427343
  %v223 = vsel %vm222, %v220, %v217
  %v224 = vadd.f32 %v210, %v223
  %v225 = vadd.f32 %v224, 1.0
  %226 = vxpose.xlu0.b32.start [1/16] %v225, 128
  %227 = vxpose.xlu0.b32.cont [2/16] 0.0, 128
  %228 = vxpose.xlu0.b32.cont [3/16] 0.0, 128
  %229 = vxpose.xlu0.b32.cont [4/16] 0.0, 128
  %230 = vxpose.xlu0.b32.cont [5/16] 0.0, 128
  %231 = vxpose.xlu0.b32.cont [6/16] 0.0, 128
  %232 = vxpose.xlu0.b32.cont [7/16] 0.0, 128
  %233 = vxpose.xlu0.b32.cont [8/16] 0.0, 128
  %234 = vxpose.xlu0.b32.cont [9/16] 0.0, 128
  %235 = vxpose.xlu0.b32.cont [10/16] 0.0, 128
  %236 = vxpose.xlu0.b32.cont [11/16] 0.0, 128
  %237 = vxpose.xlu0.b32.cont [12/16] 0.0, 128
  %238 = vxpose.xlu0.b32.cont [13/16] 0.0, 128
  %239 = vxpose.xlu0.b32.cont [14/16] 0.0, 128
  %240 = vxpose.xlu0.b32.cont [15/16] 0.0, 128
  %241 = vxpose.xlu0.b32.end [16/16] 0.0, 128
  %v242 = vpop.trf.xlu0
  %v243 = vpop.trf.xlu0
  %v244 = vpop.trf.xlu0
  %v245 = vpop.trf.xlu0
  %v246 = vpop.trf.xlu0
  %v247 = vpop.trf.xlu0
  %v248 = vpop.trf.xlu0
  %v249 = vpop.trf.xlu0
  %v250 = vpop.trf.xlu0
  %v251 = vpop.trf.xlu0
  %v252 = vpop.trf.xlu0
  %v253 = vpop.trf.xlu0
  %v254 = vpop.trf.xlu0
  %v255 = vpop.trf.xlu0
  %v256 = vpop.trf.xlu0
  %v257 = vpop.trf.xlu0
  %vm258 = vcmask 31744
  %259 = vst.msk [vmem:[%s7] sm:$0xff] %vm258, %v242
  %261 = vrot.lane.b32.xlu0 %v242, 124
  %v262 = vpop.permute.xlu0 %261
  %264 = vst.msk [vmem:[%s8] sm:$0xff] %vm258, %v262
  // Predicated region
  $region30: #{actor_beta_forward.1} parent=0 // pred_check
    _
  $region31: #{actor_beta_forward.1} parent=0 // pred_check_branch
    %266 = sbr.rel (0) target = $region33
  $region32: #{actor_beta_forward.1} parent=0 // pred_region
    _
  $region33: #{actor_beta_forward.1} parent=0 // pred_fallthru
    _
  // Predicated region
  $region34: #{actor_beta_forward.1} parent=0 // pred_check
    _
  $region35: #{actor_beta_forward.1} parent=0 // pred_check_branch
    %268 = sbr.rel (0) target = $region37
  $region36: #{actor_beta_forward.1} parent=0 // pred_region
    _
  $region37: #{actor_beta_forward.1} parent=0 // pred_fallthru
    _
  // Predicated region
  $region38: #{actor_beta_forward.1} parent=0 // pred_check
    _
  $region39: #{actor_beta_forward.1} parent=0 // pred_check_branch
    %270 = sbr.rel (0) target = $region41
  $region40: #{actor_beta_forward.1} parent=0 // pred_region
    _
  $region41: #{actor_beta_forward.1} parent=0 // pred_fallthru
    _
  // Predicated region
  $region42: #{actor_beta_forward.1} parent=0 // pred_check
    _
  $region43: #{actor_beta_forward.1} parent=0 // pred_check_branch
    %272 = sbr.rel (0) target = $region45
  $region44: #{actor_beta_forward.1} parent=0 // pred_region
    _
  $region45: #{actor_beta_forward.1} parent=0 // pred_fallthru
    _

</llo_original>
